<compile_context>
chip_gen: v6e
topology: v6e:2x2x1
jax: 0.10.0
libtpu: 0.0.40
codegen_flags: <defaults>
</compile_context>

<pallas_src>
import jax
import jax.numpy as jnp
from jax.experimental import pallas as pl
from jax.experimental.pallas import tpu as pltpu

LANE = 128            # lane width of a vreg
SUBLANE = 8           # sublane alignment
MAX_TILE_ROWS = 2048  # 2048 x 128 x 4 B = 1 MiB per f32 buffer


def _view_copy_kernel(x_ref, o_ref):
    # Hot path: lane-dense, full-vreg VMEM copy realizing the reinterpreted view.
    o_ref[...] = x_ref[...]


def detection_layer_forward(output_nchw, target, *, num_anchors, num_classes):
    """Pallas equivalent of detectionLayer.forward.

    output_nchw: (nB, nA*5+nC, nH, nW)  -- PyTorch NCHW conv output
    target     : unused by the reference forward (kept for signature parity)
    returns    : (nB, nH, nW, nA*5+nC)  -- the `.view` result
    """
    del target  # TODO(synk): reference forward never uses `target` (loss code is absent)
    nB, C, nH, nW = output_nchw.shape
    assert C == num_anchors * 5 + num_classes, "channel dim must equal nA*5 + nC"

    total = nB * C * nH * nW

    # NOTE: the truly optimal implementation is just
    #   return output_nchw.reshape(nB, nH, nW, C)
    # (metadata-only). The kernel below keeps a Pallas copy but makes it
    # lane-dense and large-tiled so it runs at the HBM roofline.

    # Raw memory reinterpretation (glue, no data movement): 1-D row-major view.
    flat = output_nchw.reshape(-1)

    # Lane-dense slab: rows of 128 elements, sublane-aligned, whole tiles only.
    rows_needed = pl.cdiv(total, LANE)
    rows_aligned = pl.cdiv(rows_needed, SUBLANE) * SUBLANE
    tile_rows = min(rows_aligned, MAX_TILE_ROWS)
    rows_padded = pl.cdiv(rows_aligned, tile_rows) * tile_rows
    padded_total = rows_padded * LANE

    if padded_total != total:
        flat = jnp.pad(flat, (0, padded_total - total))
    slab = flat.reshape(rows_padded, LANE)

    grid = (rows_padded // tile_rows,)

    out_slab = pl.pallas_call(
        _view_copy_kernel,
        out_shape=jax.ShapeDtypeStruct((rows_padded, LANE), slab.dtype),
        grid_spec=pltpu.PrefetchScalarGridSpec(
            num_scalar_prefetch=0,
            grid=grid,
            in_specs=[pl.BlockSpec((tile_rows, LANE), lambda i: (i, 0))],
            out_specs=pl.BlockSpec((tile_rows, LANE), lambda i: (i, 0)),
        ),
        compiler_params=pltpu.CompilerParams(
            dimension_semantics=("parallel",)),
    )(slab)

    # Drop padding and apply the final view shape, exactly as
    # `.view(nB, nH, nW, nA*5 + nC)`.
    out_flat = out_slab.reshape(-1)
    if padded_total != total:
        out_flat = out_flat[:total]
    return out_flat.reshape(nB, nH, nW, C)


if __name__ == "__main__":
    key = jax.random.PRNGKey(0)

    # Small, consistent shapes: nA=3 anchors, nC=5 classes -> C = 3*5 + 5 = 20
    nA, nC = 3, 5
    nB, nH, nW = 2, 8, 8
    C = nA * 5 + nC

    k1, k2 = jax.random.split(key)
    output = jax.random.normal(k1, (nB, C, nH, nW), dtype=jnp.float32)  # NCHW conv output
    target = jax.random.normal(k2, (nB, 50, 5), dtype=jnp.float32)      # unused by forward

    result = detection_layer_forward(output, target,
                                     num_anchors=nA, num_classes=nC)
    result = jax.block_until_ready(result)

    # Sanity check against the pure-JAX reference of `.view`
    ref = output.reshape(nB, nH, nW, C)
    assert result.shape == (nB, nH, nW, C)
    assert jnp.array_equal(result, ref)

    print("KERNEL_OK")
</pallas_src>

<mosaic_0001>
module attributes {stable_mosaic.version = 11 : i64} {
  func.func @_view_copy_kernel(%arg0: i32, %arg1: memref<24x128xf32, #tpu.memory_space<vmem>>, %arg2: memref<24x128xf32, #tpu.memory_space<vmem>>) attributes {dimension_semantics = [#tpu.dimension_semantics<parallel>], iteration_bounds = array<i64: 1>, scalar_prefetch = 0 : i64, scratch_operands = 0 : i64, tpu.core_type = #tpu.core_type<tc>, window_params = [{transform_indices = @transform_0, window_bounds = array<i64: 24, 128>}, {transform_indices = @transform_1, window_bounds = array<i64: 24, 128>}]} {
    %c0 = arith.constant 0 : index
    %c0_0 = arith.constant 0 : index
    %0 = vector.load %arg1[%c0, %c0_0] : memref<24x128xf32, #tpu.memory_space<vmem>>, vector<24x128xf32>
    %c0_1 = arith.constant 0 : index
    %c0_2 = arith.constant 0 : index
    %1 = vector.load %arg2[%c0_1, %c0_2] : memref<24x128xf32, #tpu.memory_space<vmem>>, vector<24x128xf32>
    tpu.vector_store %arg2[%c0_1, %c0_2], %0 {strides = array<i32>} : memref<24x128xf32, #tpu.memory_space<vmem>>, vector<24x128xf32>,
    return
  }
  func.func @transform_0(%arg0: i32) -> (i32, i32) {
    %c0_i32 = arith.constant 0 : i32
    %c0_i32_0 = arith.constant 0 : i32
    return %arg0, %c0_i32 : i32, i32
  }
  func.func @transform_1(%arg0: i32) -> (i32, i32) {
    %c0_i32 = arith.constant 0 : i32
    %c0_i32_0 = arith.constant 0 : i32
    return %arg0, %c0_i32 : i32, i32
  }
}

</mosaic_0001>

<llo_original>
// kernel: tpu_custom_call.1
$region0: #{tpu_custom_call.1}
  #allocation0 [shape = 'u32[]', space=smem, size = 0x4, offset = 0x4, fixed_abs, tag = 'smem constant byte address 0x4 - core index']
  #allocation1 [shape = 'u32[144,128]{1,0:T(1,128)}', space=vmem, size = 0x12000, scoped, tag = 'internal scratch']
  %s0 = inlined_call_operand.hbm [shape: f32[24,128], index: 0, kind: input, shape index: {}]
  %s1 = inlined_call_operand.hbm [shape: f32[24,128], index: 1, kind: output, shape index: {}]
  %s2 = sld [smem:[#allocation0]]
  $region18: #{tpu_custom_call.1} parent=0
    _
  %s4 = ssub.s32 1, %s2
  %s5 = scalar_select 0, %s4, %s2
  $region1: #{tpu_custom_call.1} parent=0
    #allocation2 [shape = 'u8[12288]{0}', space=vmem, size = 0x3000, scoped, tag = 'input window, operand 0, single buffered']
    #allocation3 [shape = 's32[1]{0}', space=sflag, size = 0x4, scoped, tag = 'scoped memory for tpu_custom_call.1']
    #allocation4 [shape = 's32[1]{0}', space=sflag, size = 0x4, scoped, tag = 'scoped memory for tpu_custom_call.1']
    #allocation5 [shape = 'u8[12288]{0}', space=vmem, size = 0x3000, scoped, tag = 'output window, operand 0, single buffered']
    %6 = vsyncpa [#allocation3], 0
    %7 = vsyncpa [#allocation4], 0
    // Predicated region
    $region2: #{tpu_custom_call.1} parent=1 // pred_check
      _
    $region3: #{tpu_custom_call.1} parent=1 // pred_check_branch
      %9 = sbr.rel (0) target = $region5
    $region4: #{tpu_custom_call.1} parent=1 // pred_region
      %s11 = ssub.s32 384, 384
      %12 = vsyncadd [#allocation3], %s11
      %s13 = sshll.u32 [#allocation2], 4
      %s14 = int_to_ptr.vmem [resolvable:$true] %s13
      %19 = dma.hbm_to_vmem [thread:$0]  %s0, 384, %s14, [#allocation3], 128, 128, 8
    $region5: #{tpu_custom_call.1} parent=1 // pred_fallthru
      _
    // Predicated region
    $region6: #{tpu_custom_call.1} parent=1 // pred_check
      _
    $region7: #{tpu_custom_call.1} parent=1 // pred_check_branch
      %21 = sbr.rel (0) target = $region9
    $region8: #{tpu_custom_call.1} parent=1 // pred_region
      %22 = dma.done [#allocation3], 384
    $region9: #{tpu_custom_call.1} parent=1 // pred_fallthru
      _
    %v23 = vld [vmem:[#allocation2] sm:$0xff]
    %v24 = vld [vmem:[#allocation2 + $0x8] sm:$0xff]
    %v25 = vld [vmem:[#allocation2 + $0x10] sm:$0xff]
    %26 = vst [vmem:[#allocation5] sm:$0xff] %v23
    %27 = vst [vmem:[#allocation5 + $0x8] sm:$0xff] %v24
    %28 = vst [vmem:[#allocation5 + $0x10] sm:$0xff] %v25
    // Predicated region
    $region10: #{tpu_custom_call.1} parent=1 // pred_check
      _
    $region11: #{tpu_custom_call.1} parent=1 // pred_check_branch
      %30 = sbr.rel (0) target = $region13
    $region12: #{tpu_custom_call.1} parent=1 // pred_region
      %s32 = ssub.s32 384, 384
      %33 = vsyncadd [#allocation4], %s32
      %s34 = sshll.u32 [#allocation5], 4
      %s35 = int_to_ptr.vmem [resolvable:$true] %s34
      %40 = dma.vmem_to_hbm [thread:$0]  %s35, 384, %s1, [#allocation4], 128, 128, 8
    $region13: #{tpu_custom_call.1} parent=1 // pred_fallthru
      _
    // Predicated region
    $region14: #{tpu_custom_call.1} parent=1 // pred_check
      _
    $region15: #{tpu_custom_call.1} parent=1 // pred_check_branch
      %42 = sbr.rel (0) target = $region17
    $region16: #{tpu_custom_call.1} parent=1 // pred_region
      %43 = dma.done [#allocation4], 384
    $region17: #{tpu_custom_call.1} parent=1 // pred_fallthru
      _
    %44 = vsyncpa [#allocation3], 1
    %45 = vsyncpa [#allocation4], 1

</llo_original>
